<compile_context>
chip_gen: v5e
topology: v5e:2x2
jax: 0.10.0
libtpu: 0.0.40
codegen_flags: <defaults>
</compile_context>

<pallas_src>
import functools

import jax
import jax.numpy as jnp
from jax.experimental import pallas as pl
from jax.experimental.pallas import tpu as pltpu


def _round_up(x: int, m: int) -> int:
    return ((x + m - 1) // m) * m


def _residual_linear_kernel(x_lhs_ref, w_ref, x_res_ref, b_ref, o_ref, acc_ref):
    """Grid is (i=M tiles, j=N tiles, k=K tiles); k is the reduction axis."""
    k = pl.program_id(2)

    @pl.when(k == 0)
    def _init():
        acc_ref[...] = jnp.zeros_like(acc_ref)

    # bf16 x bf16 -> f32 accumulate on the MXU.
    acc_ref[...] += jnp.dot(
        x_lhs_ref[...], w_ref[...], preferred_element_type=jnp.float32
    )

    @pl.when(k == pl.num_programs(2) - 1)
    def _epilogue():
        # Bias + residual added exactly once, in f32, then cast to output dtype.
        o_ref[...] = (acc_ref[...] + b_ref[...] + x_res_ref[...]).astype(o_ref.dtype)


@functools.partial(jax.jit, static_argnames=("tm", "tn", "tk"))
def residual_linear(x, w, b, *, tm: int = 256, tn: int = 256, tk: int = 256):
    """Fused residual linear: out = x @ w + b + x.

    x: (N, H) f32, w: (H, H) f32, b: (H,) f32.
    Inputs are padded to lane-dense, MXU-friendly tile multiples; the matmul
    operands are cast to bf16, the accumulator / bias / residual stay f32.
    """
    N, H = x.shape
    assert w.shape == (H, H) and b.shape == (H,)

    # Clamp tiles to the (padded) problem size; keep them multiples of
    # (16, 128) so bf16 sublane packing and lane width are always dense.
    tm = min(tm, _round_up(N, 16))
    tk = min(tk, _round_up(H, 128))
    tn = min(tn, _round_up(H, 128))

    Np = _round_up(N, tm)   # padded rows
    Hk = _round_up(H, tk)   # padded reduction dim
    Hn = _round_up(H, tn)   # padded output feature dim

    # bf16 operands for the MXU; residual / bias remain f32 for the epilogue.
    x_lhs = jnp.pad(x.astype(jnp.bfloat16), ((0, Np - N), (0, Hk - H)))
    w_p = jnp.pad(w.astype(jnp.bfloat16), ((0, Hk - H), (0, Hn - H)))
    x_res = jnp.pad(x, ((0, Np - N), (0, Hn - H)))
    b_p = jnp.pad(b, (0, Hn - H)).reshape(1, Hn)

    grid = (Np // tm, Hn // tn, Hk // tk)

    out_padded = pl.pallas_call(
        _residual_linear_kernel,
        out_shape=jax.ShapeDtypeStruct((Np, Hn), x.dtype),
        grid=grid,
        in_specs=[
            pl.BlockSpec((tm, tk), lambda i, j, k: (i, k)),   # x (LHS, bf16)
            pl.BlockSpec((tk, tn), lambda i, j, k: (k, j)),   # W (RHS, bf16)
            pl.BlockSpec((tm, tn), lambda i, j, k: (i, j)),   # x (residual, f32)
            pl.BlockSpec((1, tn), lambda i, j, k: (0, j)),    # bias (f32)
        ],
        out_specs=pl.BlockSpec((tm, tn), lambda i, j, k: (i, j)),
        scratch_shapes=[pltpu.VMEM((tm, tn), jnp.float32)],
        compiler_params=pltpu.CompilerParams(
            dimension_semantics=("parallel", "parallel", "arbitrary"),
            vmem_limit_bytes=48 * 1024 * 1024,
        ),
    )(x_lhs, w_p, x_res, b_p)

    return out_padded[:N, :H]


def _reference(x, w, b):
    """Reference with the same bf16 input rounding the kernel applies."""
    xq = x.astype(jnp.bfloat16).astype(jnp.float32)
    wq = w.astype(jnp.bfloat16).astype(jnp.float32)
    y = jnp.dot(xq, wq, precision=jax.lax.Precision.HIGHEST)
    return y + b + x


if __name__ == "__main__":
    key = jax.random.PRNGKey(0)
    kx, kw, kb, kx2, kw2, kb2 = jax.random.split(key, 6)

    # --- Small shape implied by the module usage: batch=2, seq=8, hidden=32 ---
    batch, seq, hidden = 2, 8, 32
    N = batch * seq
    x = jax.random.normal(kx, (N, hidden), dtype=jnp.float32)
    w = jax.random.normal(kw, (hidden, hidden), dtype=jnp.float32) * 0.02
    b = jax.random.normal(kb, (hidden,), dtype=jnp.float32) * 0.02

    out = jax.block_until_ready(residual_linear(x, w, b))
    ref = _reference(x, w, b)
    assert out.shape == (N, hidden)
    assert jnp.allclose(out, ref, atol=2e-3, rtol=2e-3)

    # --- Larger shape to exercise the tiled K reduction and multi-tile grid ---
    N2, H2 = 256, 512
    x2 = jax.random.normal(kx2, (N2, H2), dtype=jnp.float32)
    w2 = jax.random.normal(kw2, (H2, H2), dtype=jnp.float32) * 0.02
    b2 = jax.random.normal(kb2, (H2,), dtype=jnp.float32) * 0.02

    out2 = jax.block_until_ready(residual_linear(x2, w2, b2))
    ref2 = _reference(x2, w2, b2)
    assert out2.shape == (N2, H2)
    assert jnp.allclose(out2, ref2, atol=5e-3, rtol=5e-3)

    print("KERNEL_OK")
</pallas_src>

<mosaic_0001>
module attributes {stable_mosaic.version = 11 : i64} {
  func.func @_residual_linear_kernel(%arg0: i32, %arg1: i32, %arg2: i32, %arg3: memref<16x128xbf16, #tpu.memory_space<vmem>>, %arg4: memref<128x128xbf16, #tpu.memory_space<vmem>>, %arg5: memref<16x128xf32, #tpu.memory_space<vmem>>, %arg6: memref<1x128xf32, #tpu.memory_space<vmem>>, %arg7: memref<16x128xf32, #tpu.memory_space<vmem>>, %arg8: memref<16x128xf32, #tpu.memory_space<vmem>>) attributes {dimension_semantics = [#tpu.dimension_semantics<parallel>, #tpu.dimension_semantics<parallel>, #tpu.dimension_semantics<arbitrary>], iteration_bounds = array<i64: 1, 1, 1>, scalar_prefetch = 0 : i64, scratch_operands = 1 : i64, tpu.core_type = #tpu.core_type<tc>, window_params = [{transform_indices = @transform_0, window_bounds = array<i64: 16, 128>}, {transform_indices = @transform_1, window_bounds = array<i64: 128, 128>}, {transform_indices = @transform_2, window_bounds = array<i64: 16, 128>}, {transform_indices = @transform_3, window_bounds = array<i64: 1, 128>}, {transform_indices = @transform_4, window_bounds = array<i64: 16, 128>}]} {
    %c0_i32 = arith.constant 0 : i32
    %0 = arith.cmpi eq, %arg2, %c0_i32 : i32
    %1 = arith.extui %0 : i1 to i32
    %c0_i32_0 = arith.constant 0 : i32
    %2 = arith.cmpi ne, %1, %c0_i32_0 : i32
    scf.if %2 {
      %cst_10 = arith.constant 0.000000e+00 : f32
      %12 = vector.broadcast %cst_10 : f32 to vector<16x128xf32>
      %c0_11 = arith.constant 0 : index
      %c0_12 = arith.constant 0 : index
      %13 = vector.load %arg8[%c0_11, %c0_12] : memref<16x128xf32, #tpu.memory_space<vmem>>, vector<16x128xf32>
      tpu.vector_store %arg8[%c0_11, %c0_12], %12 {strides = array<i32>} : memref<16x128xf32, #tpu.memory_space<vmem>>, vector<16x128xf32>,
    } else {
    }
    %c0 = arith.constant 0 : index
    %c0_1 = arith.constant 0 : index
    %3 = vector.load %arg8[%c0, %c0_1] : memref<16x128xf32, #tpu.memory_space<vmem>>, vector<16x128xf32>
    %c0_2 = arith.constant 0 : index
    %c0_3 = arith.constant 0 : index
    %4 = vector.load %arg3[%c0_2, %c0_3] : memref<16x128xbf16, #tpu.memory_space<vmem>>, vector<16x128xbf16>
    %c0_4 = arith.constant 0 : index
    %c0_5 = arith.constant 0 : index
    %5 = vector.load %arg4[%c0_4, %c0_5] : memref<128x128xbf16, #tpu.memory_space<vmem>>, vector<128x128xbf16>
    %cst = arith.constant dense<0.000000e+00> : vector<16x128xf32>
    %6 = tpu.matmul %4, %5, %cst {dimension_numbers = #tpu.dot_dimension_numbers<[1], [0], [0], [1], [0, 0, 1, 1], [], []>} : vector<16x128xbf16>, vector<128x128xbf16>, vector<16x128xf32> -> vector<16x128xf32>
    %7 = arith.addf %3, %6 : vector<16x128xf32>
    %c0_6 = arith.constant 0 : index
    %c0_7 = arith.constant 0 : index
    %8 = vector.load %arg8[%c0_6, %c0_7] : memref<16x128xf32, #tpu.memory_space<vmem>>, vector<16x128xf32>
    tpu.vector_store %arg8[%c0_6, %c0_7], %7 {strides = array<i32>} : memref<16x128xf32, #tpu.memory_space<vmem>>, vector<16x128xf32>,
    %c0_i32_8 = arith.constant 0 : i32
    %9 = arith.cmpi eq, %arg2, %c0_i32_8 : i32
    %10 = arith.extui %9 : i1 to i32
    %c0_i32_9 = arith.constant 0 : i32
    %11 = arith.cmpi ne, %10, %c0_i32_9 : i32
    scf.if %11 {
      %c0_10 = arith.constant 0 : index
      %c0_11 = arith.constant 0 : index
      %12 = vector.load %arg8[%c0_10, %c0_11] : memref<16x128xf32, #tpu.memory_space<vmem>>, vector<16x128xf32>
      %c0_12 = arith.constant 0 : index
      %c0_13 = arith.constant 0 : index
      %13 = vector.load %arg6[%c0_12, %c0_13] : memref<1x128xf32, #tpu.memory_space<vmem>>, vector<1x128xf32>
      %14 = vector.broadcast %13 : vector<1x128xf32> to vector<16x128xf32>
      %15 = arith.addf %12, %14 : vector<16x128xf32>
      %c0_14 = arith.constant 0 : index
      %c0_15 = arith.constant 0 : index
      %16 = vector.load %arg5[%c0_14, %c0_15] : memref<16x128xf32, #tpu.memory_space<vmem>>, vector<16x128xf32>
      %17 = arith.addf %15, %16 : vector<16x128xf32>
      %c0_16 = arith.constant 0 : index
      %c0_17 = arith.constant 0 : index
      %18 = vector.load %arg7[%c0_16, %c0_17] : memref<16x128xf32, #tpu.memory_space<vmem>>, vector<16x128xf32>
      tpu.vector_store %arg7[%c0_16, %c0_17], %17 {strides = array<i32>} : memref<16x128xf32, #tpu.memory_space<vmem>>, vector<16x128xf32>,
    } else {
    }
    return
  }
  func.func @transform_0(%arg0: i32, %arg1: i32, %arg2: i32) -> (i32, i32) {
    %c0_i32 = arith.constant 0 : i32
    return %arg0, %arg2 : i32, i32
  }
  func.func @transform_1(%arg0: i32, %arg1: i32, %arg2: i32) -> (i32, i32) {
    %c0_i32 = arith.constant 0 : i32
    return %arg2, %arg1 : i32, i32
  }
  func.func @transform_2(%arg0: i32, %arg1: i32, %arg2: i32) -> (i32, i32) {
    %c0_i32 = arith.constant 0 : i32
    return %arg0, %arg1 : i32, i32
  }
  func.func @transform_3(%arg0: i32, %arg1: i32, %arg2: i32) -> (i32, i32) {
    %c0_i32 = arith.constant 0 : i32
    %c0_i32_0 = arith.constant 0 : i32
    return %c0_i32, %arg1 : i32, i32
  }
  func.func @transform_4(%arg0: i32, %arg1: i32, %arg2: i32) -> (i32, i32) {
    %c0_i32 = arith.constant 0 : i32
    return %arg0, %arg1 : i32, i32
  }
}

</mosaic_0001>

<llo_original>
// kernel: residual_linear.1
$region0: #{residual_linear.1}
  #allocation0 [shape = 'u32[]', space=smem, size = 0x4, offset = 0x4, fixed_abs, tag = 'smem constant byte address 0x4 - core index']
  #allocation1 [shape = 'u32[72,128]{1,0:T(1,128)}', space=vmem, size = 0x9000, scoped, tag = 'internal scratch']
  #allocation2 [shape = 'f32[16,128]{1,0:T(8,128)}', space=vmem, size = 0x2000, scoped, tag = 'scratch operand']
  %s0 = inlined_call_operand.vmem [shape: bf16[16,128], index: 0, kind: input, shape index: {}]
  %s1 = inlined_call_operand.vmem [shape: bf16[128,128], index: 1, kind: input, shape index: {}]
  %s2 = inlined_call_operand.vmem [shape: f32[16,128], index: 2, kind: input, shape index: {}]
  %s3 = inlined_call_operand.vmem [shape: f32[1,128], index: 3, kind: input, shape index: {}]
  %s4 = inlined_call_operand.hbm [shape: f32[16,128], index: 4, kind: output, shape index: {}]
  %s5 = sld [smem:[#allocation0]]
  $region34: #{residual_linear.1} parent=0
    _
  %s7 = ssub.s32 1, %s5
  %s8 = scalar_select 0, %s7, %s5
  $region1: #{residual_linear.1} parent=0
    #allocation3 [shape = 'u8[8192]{0}', space=vmem, size = 0x2000, scoped, tag = 'output window, operand 0, single buffered']
    #allocation4 [shape = 's32[1]{0}', space=sflag, size = 0x4, scoped, tag = 'scoped memory for residual_linear.1']
    %9 = vsyncpa [#allocation4], 0
    // Predicated region
    $region2: #{residual_linear.1} parent=1 // pred_check
      _
    $region3: #{residual_linear.1} parent=1 // pred_check_branch
      %11 = sbr.rel (0) target = $region5
    $region4: #{residual_linear.1} parent=1 // pred_region
      _
    $region5: #{residual_linear.1} parent=1 // pred_fallthru
      _
    // Predicated region
    $region6: #{residual_linear.1} parent=1 // pred_check
      _
    $region7: #{residual_linear.1} parent=1 // pred_check_branch
      %13 = sbr.rel (0) target = $region9
    $region8: #{residual_linear.1} parent=1 // pred_region
      _
    $region9: #{residual_linear.1} parent=1 // pred_fallthru
      _
    // Predicated region
    $region10: #{residual_linear.1} parent=1 // pred_check
      _
    $region11: #{residual_linear.1} parent=1 // pred_check_branch
      %15 = sbr.rel (0) target = $region13
    $region12: #{residual_linear.1} parent=1 // pred_region
      _
    $region13: #{residual_linear.1} parent=1 // pred_fallthru
      _
    // Predicated region
    $region14: #{residual_linear.1} parent=1 // pred_check
      _
    $region15: #{residual_linear.1} parent=1 // pred_check_branch
      %17 = sbr.rel (0) target = $region17
    $region16: #{residual_linear.1} parent=1 // pred_region
      _
    $region17: #{residual_linear.1} parent=1 // pred_fallthru
      _
    %p18 = scmp.eq.s32.totalorder 0, 0
    // Predicated region
    $region18: #{residual_linear.1} parent=1 // pred_check
      %p19 = pneg %p18
    $region19: #{residual_linear.1} parent=1 // pred_check_branch
      %21 = sbr.rel (%p19) target = $region21
    $region20: #{residual_linear.1} parent=1 // pred_region
      %22 = vst [vmem:[#allocation2] sm:$0xff] 0.0
      %23 = vst [vmem:[#allocation2 + $0x8] sm:$0xff] 0.0
    $region21: #{residual_linear.1} parent=1 // pred_fallthru
      _
    %v24 = vld [vmem:[#allocation2] sm:$0xff]
    %v25 = vld [vmem:[#allocation2 + $0x8] sm:$0xff]
    %v26 = vld [vmem:[%s0] sm:$0xf]
    %v27 = vld [vmem:[%s0 + $0x4] sm:$0xf]
    %v28 = vld [vmem:[%s1] sm:$0xf]
    %v29 = vld [vmem:[%s1 + $0x4] sm:$0xf]
    %v30 = vld [vmem:[%s1 + $0x8] sm:$0xf]
    %v31 = vld [vmem:[%s1 + $0xc] sm:$0xf]
    %v32 = vld [vmem:[%s1 + $0x10] sm:$0xf]
    %v33 = vld [vmem:[%s1 + $0x14] sm:$0xf]
    %v34 = vld [vmem:[%s1 + $0x18] sm:$0xf]
    %v35 = vld [vmem:[%s1 + $0x1c] sm:$0xf]
    %v36 = vld [vmem:[%s1 + $0x20] sm:$0xf]
    %v37 = vld [vmem:[%s1 + $0x24] sm:$0xf]
    %v38 = vld [vmem:[%s1 + $0x28] sm:$0xf]
    %v39 = vld [vmem:[%s1 + $0x2c] sm:$0xf]
    %v40 = vld [vmem:[%s1 + $0x30] sm:$0xf]
    %v41 = vld [vmem:[%s1 + $0x34] sm:$0xf]
    %v42 = vld [vmem:[%s1 + $0x38] sm:$0xf]
    %v43 = vld [vmem:[%s1 + $0x3c] sm:$0xf]
    %v46 = vunpack.c.l.b16 %v26
    %v47 = vunpack.c.l.b16 %v27
    %v48 = vpack.c.b16 %v47, %v46
    %v66 = vunpack.c.l.b16 %v28
    %v67 = vunpack.c.l.b16 %v29
    %v68 = vunpack.c.l.b16 %v30
    %v69 = vunpack.c.l.b16 %v31
    %v70 = vunpack.c.l.b16 %v32
    %v71 = vunpack.c.l.b16 %v33
    %v72 = vunpack.c.l.b16 %v34
    %v73 = vunpack.c.l.b16 %v35
    %v74 = vunpack.c.l.b16 %v36
    %v75 = vunpack.c.l.b16 %v37
    %v76 = vunpack.c.l.b16 %v38
    %v77 = vunpack.c.l.b16 %v39
    %v78 = vunpack.c.l.b16 %v40
    %v79 = vunpack.c.l.b16 %v41
    %v80 = vunpack.c.l.b16 %v42
    %v81 = vunpack.c.l.b16 %v43
    %v82 = vpack.c.b16 %v67, %v66
    %v83 = vpack.c.b16 %v69, %v68
    %v84 = vpack.c.b16 %v71, %v70
    %v85 = vpack.c.b16 %v73, %v72
    %v86 = vpack.c.b16 %v75, %v74
    %v87 = vpack.c.b16 %v77, %v76
    %v88 = vpack.c.b16 %v79, %v78
    %v89 = vpack.c.b16 %v81, %v80
    %98 = vmatpush.bf16.msra.mxu0 %v89
    %99 = vmatpush.bf16.msra.mxu0 %v88
    %100 = vmatpush.bf16.msra.mxu0 %v87
    %101 = vmatpush.bf16.msra.mxu0 %v86
    %102 = vmatpush.bf16.msra.mxu0 %v85
    %103 = vmatpush.bf16.msra.mxu0 %v84
    %104 = vmatpush.bf16.msra.mxu0 %v83
    %105 = vmatpush.bf16.msra.mxu0 %v82
    %106 = vmatmul.bf16.gmra.mxu0 %v48
    %v107 = vpop.f32.mrf.mxu0
    %v108 = vadd.f32 0.0, %v107
    %v109 = vpop.f32.mrf.mxu0
    %v110 = vadd.f32 0.0, %v109
    %111 = vdwg.mxu0
    %v112 = vadd.f32 %v24, %v108
    %v113 = vadd.f32 %v25, %v110
    %114 = vst [vmem:[#allocation2] sm:$0xff] %v112
    %115 = vst [vmem:[#allocation2 + $0x8] sm:$0xff] %v113
    // Predicated region
    $region22: #{residual_linear.1} parent=1 // pred_check
      %p116 = pneg %p18
    $region23: #{residual_linear.1} parent=1 // pred_check_branch
      %118 = sbr.rel (%p116) target = $region25
    $region24: #{residual_linear.1} parent=1 // pred_region
      %v119 = vld [vmem:[#allocation2] sm:$0xff]
      %v120 = vld [vmem:[#allocation2 + $0x8] sm:$0xff]
      %v121 = vld [vmem:[%s3] sm:$0x1]
      %v123 = vperm.slane %v121, 0
      %v125 = vadd.f32 %v119, %v123
      %v126 = vadd.f32 %v120, %v123
      %v127 = vld [vmem:[%s2] sm:$0xff]
      %v128 = vld [vmem:[%s2 + $0x8] sm:$0xff]
      %v129 = vadd.f32 %v125, %v127
      %v130 = vadd.f32 %v126, %v128
      %131 = vst [vmem:[#allocation3] sm:$0xff] %v129
      %132 = vst [vmem:[#allocation3 + $0x8] sm:$0xff] %v130
    $region25: #{residual_linear.1} parent=1 // pred_fallthru
      _
    // Predicated region
    $region26: #{residual_linear.1} parent=1 // pred_check
      _
    $region27: #{residual_linear.1} parent=1 // pred_check_branch
      %134 = sbr.rel (0) target = $region29
    $region28: #{residual_linear.1} parent=1 // pred_region
      %136 = vsyncadd [#allocation4], 0
      %s137 = sshll.u32 [#allocation3], 4
      %s138 = int_to_ptr.vmem [resolvable:$true] %s137
      %s139 = sshll.u32 %s4, 4
      %s140 = int_to_ptr.hbm [resolvable:$true] %s139
      %145 = dma.vmem_to_hbm [thread:$0]  %s138, 256, %s140, [#allocation4], 128, 128, 8
    $region29: #{residual_linear.1} parent=1 // pred_fallthru
      _
    // Predicated region
    $region30: #{residual_linear.1} parent=1 // pred_check
      _
    $region31: #{residual_linear.1} parent=1 // pred_check_branch
      %147 = sbr.rel (0) target = $region33
    $region32: #{residual_linear.1} parent=1 // pred_region
      %149 = dma.done [#allocation4], 256
    $region33: #{residual_linear.1} parent=1 // pred_fallthru
      _
    %150 = vsyncpa [#allocation4], 1

</llo_original>
